<compile_context>
chip_gen: v6e
topology: v6e:2x2x1
jax: 0.10.0
libtpu: 0.0.40
codegen_flags: <defaults>
</compile_context>

<pallas_src>
import jax
import jax.numpy as jnp
from jax.experimental import pallas as pl
from jax.experimental.pallas import tpu as pltpu

IN_FEATURES = 512
OUT_FEATURES = 256


def _round_up(n, m):
    return ((n + m - 1) // m) * m


def _pick_batch_tile(B):
    """Rows per grid step."""
    if B <= 256:
        # Single step; keep rows a multiple of 16 (bf16-native sublane packing
        # after the in-kernel cast, and >= the (8,128) f32 block constraint).
        return _round_up(B, 16)
    # Aim for >= 2 grid steps so ("parallel",) can use both v7x TensorCores;
    # cap at 2048 rows (double-buffered VMEM footprint ~13 MiB).
    tb = _round_up(pl.cdiv(B, 2), 256)
    return min(tb, 2048)


def linear_prelu_kernel(alpha_ref, x_ref, w_ref, b_ref, o_ref):
    # alpha_ref: SMEM (1,)      f32 scalar -- PReLU negative slope
    # x_ref:     VMEM (tb, 512) f32 (cast to bf16 here, not in the wrapper)
    # w_ref:     VMEM (512,256) bf16 (resident across all grid steps)
    # b_ref:     VMEM (1, 256)  f32
    # o_ref:     VMEM (tb, 256) f32
    x_bf16 = x_ref[...].astype(jnp.bfloat16)        # in-kernel cast: no extra HBM pass
    y = jnp.dot(x_bf16, w_ref[...], preferred_element_type=jnp.float32)
    y = y + b_ref[...]                               # broadcast bias over batch rows
    alpha = alpha_ref[0]
    # PReLU: y if y > 0 else alpha * y  (y == 0 -> 0, matches PyTorch)
    o_ref[...] = jnp.where(y > 0, y, alpha * y).astype(o_ref.dtype)


def neural_network_m_forward(x, w, b, alpha):
    """x: (B, 512) f32, w: (512, 256), b: (256,), alpha: scalar. Returns (B, 256) f32."""
    B = x.shape[0]
    tb = _pick_batch_tile(B)
    num_steps = pl.cdiv(B, tb)

    # Param casts (once; constant-folded under jit with static params).
    w_bf16 = w.astype(jnp.bfloat16)
    b2d = b.astype(jnp.float32).reshape(1, OUT_FEATURES)
    alpha1d = jnp.asarray(alpha, jnp.float32).reshape(1)

    x_bytes = jnp.dtype(x.dtype).itemsize
    # Double-buffered x/out tiles; weight/bias counted once (same block every
    # step) plus a small compiler-scratch headroom. Cap well under 32 MiB.
    vmem_bytes = (2 * tb * IN_FEATURES * x_bytes          # x tiles
                  + 2 * tb * OUT_FEATURES * 4             # out tiles (f32)
                  + IN_FEATURES * OUT_FEATURES * 2        # resident weight (bf16)
                  + OUT_FEATURES * 4)                     # bias
    vmem_limit = min(vmem_bytes + (4 << 20), 32 << 20)

    return pl.pallas_call(
        linear_prelu_kernel,
        out_shape=jax.ShapeDtypeStruct((B, OUT_FEATURES), jnp.float32),
        grid_spec=pltpu.PrefetchScalarGridSpec(
            num_scalar_prefetch=0,
            grid=(num_steps,),
            in_specs=[
                # alpha lives in SMEM (scalar)
                pl.BlockSpec(memory_space=pltpu.SMEM),
                # x tiled over batch; ragged last block handled by Pallas
                pl.BlockSpec((tb, IN_FEATURES), lambda i: (i, 0)),
                # full weight resident each step
                pl.BlockSpec((IN_FEATURES, OUT_FEATURES), lambda i: (0, 0)),
                # bias row
                pl.BlockSpec((1, OUT_FEATURES), lambda i: (0, 0)),
            ],
            out_specs=pl.BlockSpec((tb, OUT_FEATURES), lambda i: (i, 0)),
        ),
        compiler_params=pltpu.CompilerParams(
            dimension_semantics=("parallel",),
            vmem_limit_bytes=vmem_limit,
        ),
    )(alpha1d, x, w_bf16, b2d)


if __name__ == "__main__":
    key = jax.random.PRNGKey(0)
    kx, kw, kb = jax.random.split(key, 3)

    # nn.Linear-style init: U(-1/sqrt(fan_in), 1/sqrt(fan_in)); PReLU alpha=0.25.
    bound = 1.0 / jnp.sqrt(jnp.float32(IN_FEATURES))
    w = jax.random.uniform(kw, (IN_FEATURES, OUT_FEATURES), jnp.float32,
                           minval=-bound, maxval=bound)
    b = jax.random.uniform(kb, (OUT_FEATURES,), jnp.float32,
                           minval=-bound, maxval=bound)
    alpha = jnp.float32(0.25)

    # Small batch; deliberately NOT a multiple of 16 to exercise the ragged
    # last-block path (OOB reads padded, OOB writes clipped).
    B = 12
    x = jax.random.normal(kx, (B, IN_FEATURES), jnp.float32)

    out = neural_network_m_forward(x, w, b, alpha)
    out = jax.block_until_ready(out)

    # Reference in plain JAX with the same bf16 rounding of MXU inputs,
    # f32 accumulate/epilogue.
    xb = x.astype(jnp.bfloat16).astype(jnp.float32)
    wb = w.astype(jnp.bfloat16).astype(jnp.float32)
    ref = xb @ wb + b[None, :]
    ref = jnp.where(ref > 0, ref, alpha * ref)

    assert out.shape == (B, OUT_FEATURES)
    assert out.dtype == jnp.float32
    assert jnp.allclose(out, ref, atol=1e-3, rtol=1e-3)

    print("KERNEL_OK")
</pallas_src>

<mosaic_0001>
module attributes {stable_mosaic.version = 11 : i64} {
  func.func @linear_prelu_kernel(%arg0: i32, %arg1: memref<1xf32, #tpu.memory_space<smem>>, %arg2: memref<16x512xf32, #tpu.memory_space<vmem>>, %arg3: memref<512x256xbf16, #tpu.memory_space<vmem>>, %arg4: memref<1x256xf32, #tpu.memory_space<vmem>>, %arg5: memref<16x256xf32, #tpu.memory_space<vmem>>) attributes {dimension_semantics = [#tpu.dimension_semantics<parallel>], iteration_bounds = array<i64: 1>, scalar_prefetch = 0 : i64, scratch_operands = 0 : i64, tpu.core_type = #tpu.core_type<tc>, window_params = [{transform_indices = @transform_0, window_bounds = array<i64: 1>}, {transform_indices = @transform_1, window_bounds = array<i64: 16, 512>}, {pipeline_mode = #tpu.pipeline_mode<synchronous>, transform_indices = @transform_2, window_bounds = array<i64: 512, 256>}, {pipeline_mode = #tpu.pipeline_mode<synchronous>, transform_indices = @transform_3, window_bounds = array<i64: 1, 256>}, {transform_indices = @transform_4, window_bounds = array<i64: 16, 256>}]} {
    %c0 = arith.constant 0 : index
    %c0_0 = arith.constant 0 : index
    %0 = vector.load %arg2[%c0, %c0_0] : memref<16x512xf32, #tpu.memory_space<vmem>>, vector<16x512xf32>
    %1 = arith.truncf %0 : vector<16x512xf32> to vector<16x512xbf16>
    %c0_1 = arith.constant 0 : index
    %c0_2 = arith.constant 0 : index
    %2 = vector.load %arg3[%c0_1, %c0_2] : memref<512x256xbf16, #tpu.memory_space<vmem>>, vector<512x256xbf16>
    %cst = arith.constant dense<0.000000e+00> : vector<16x256xf32>
    %3 = tpu.matmul %1, %2, %cst {dimension_numbers = #tpu.dot_dimension_numbers<[1], [0], [0], [1], [0, 0, 1, 1], [], []>} : vector<16x512xbf16>, vector<512x256xbf16>, vector<16x256xf32> -> vector<16x256xf32>
    %c0_3 = arith.constant 0 : index
    %c0_4 = arith.constant 0 : index
    %4 = vector.load %arg4[%c0_3, %c0_4] : memref<1x256xf32, #tpu.memory_space<vmem>>, vector<1x256xf32>
    %5 = vector.broadcast %4 : vector<1x256xf32> to vector<16x256xf32>
    %6 = arith.addf %3, %5 : vector<16x256xf32>
    %c0_5 = arith.constant 0 : index
    %7 = memref.load %arg1[%c0_5] : memref<1xf32, #tpu.memory_space<smem>>
    %cst_6 = arith.constant 0.000000e+00 : f32
    %8 = vector.broadcast %cst_6 : f32 to vector<16x256xf32>
    %9 = arith.cmpf ogt, %6, %8 : vector<16x256xf32>
    %10 = vector.broadcast %7 : f32 to vector<16x256xf32>
    %11 = arith.mulf %10, %6 : vector<16x256xf32>
    %12 = arith.select %9, %6, %11 : vector<16x256xi1>, vector<16x256xf32>
    %c0_7 = arith.constant 0 : index
    %c0_8 = arith.constant 0 : index
    %13 = vector.load %arg5[%c0_7, %c0_8] : memref<16x256xf32, #tpu.memory_space<vmem>>, vector<16x256xf32>
    tpu.vector_store %arg5[%c0_7, %c0_8], %12 {strides = array<i32>} : memref<16x256xf32, #tpu.memory_space<vmem>>, vector<16x256xf32>,
    return
  }
  func.func @transform_0(%arg0: i32) -> i32 {
    %c0_i32 = arith.constant 0 : i32
    %c0_i32_0 = arith.constant 0 : i32
    return %c0_i32 : i32
  }
  func.func @transform_1(%arg0: i32) -> (i32, i32) {
    %c0_i32 = arith.constant 0 : i32
    %c0_i32_0 = arith.constant 0 : i32
    return %arg0, %c0_i32 : i32, i32
  }
  func.func @transform_2(%arg0: i32) -> (i32, i32) {
    %c0_i32 = arith.constant 0 : i32
    %c0_i32_0 = arith.constant 0 : i32
    %c0_i32_1 = arith.constant 0 : i32
    return %c0_i32, %c0_i32_0 : i32, i32
  }
  func.func @transform_3(%arg0: i32) -> (i32, i32) {
    %c0_i32 = arith.constant 0 : i32
    %c0_i32_0 = arith.constant 0 : i32
    %c0_i32_1 = arith.constant 0 : i32
    return %c0_i32, %c0_i32_0 : i32, i32
  }
  func.func @transform_4(%arg0: i32) -> (i32, i32) {
    %c0_i32 = arith.constant 0 : i32
    %c0_i32_0 = arith.constant 0 : i32
    return %arg0, %c0_i32 : i32, i32
  }
}

</mosaic_0001>

<llo_original>
// kernel: tpu_custom_call.1
$region0: #{tpu_custom_call.1}
  #allocation0 [shape = 'u32[]', space=smem, size = 0x4, offset = 0x4, fixed_abs, tag = 'smem constant byte address 0x4 - core index']
  #allocation1 [shape = 'u32[144,128]{1,0:T(1,128)}', space=vmem, size = 0x12000, scoped, tag = 'internal scratch']
  #allocation2 [shape = 'f32[1]{0:T(128)S(6)}', space=smem, size = 0x200, scoped, tag = 'scoped memory for tpu_custom_call.1']
  %s0 = inlined_call_operand.<no memory space> [shape: f32[1], index: 0, kind: input, shape index: {}]
  %s1 = inlined_call_operand.hbm [shape: f32[12,512], index: 1, kind: input, shape index: {}]
  %s2 = inlined_call_operand.hbm [shape: bf16[512,256], index: 2, kind: input, shape index: {}]
  %s3 = inlined_call_operand.vmem [shape: f32[1,256], index: 3, kind: input, shape index: {}]
  %s4 = inlined_call_operand.hbm [shape: f32[12,256], index: 4, kind: output, shape index: {}]
  %s5 = sld [smem:[#allocation0]]
  $region34: #{tpu_custom_call.1} parent=0
    _
  %s7 = ssub.s32 1, %s5
  %s8 = scalar_select 0, %s7, %s5
  %9 = sst [smem:[#allocation2]] %s0
  $region1: #{tpu_custom_call.1} parent=0
    #allocation3 [shape = 'u8[32768]{0}', space=vmem, size = 0x8000, scoped, tag = 'input window, operand 1, single buffered']
    #allocation4 [shape = 's32[1]{0}', space=sflag, size = 0x4, scoped, tag = 'scoped memory for tpu_custom_call.1']
    #allocation5 [shape = 's32[1]{0}', space=sflag, size = 0x4, scoped, tag = 'scoped memory for tpu_custom_call.1']
    #allocation6 [shape = 'u8[262144]{0}', space=vmem, size = 0x40000, scoped, tag = 'input window, operand 2, single buffered']
    #allocation7 [shape = 's32[1]{0}', space=sflag, size = 0x4, scoped, tag = 'scoped memory for tpu_custom_call.1']
    #allocation8 [shape = 'u8[16384]{0}', space=vmem, size = 0x4000, scoped, tag = 'output window, operand 0, single buffered']
    %10 = vsyncpa [#allocation4], 0
    %11 = vsyncpa [#allocation7], 0
    %12 = vsyncpa [#allocation5], 0
    // Predicated region
    $region2: #{tpu_custom_call.1} parent=1 // pred_check
      _
    $region3: #{tpu_custom_call.1} parent=1 // pred_check_branch
      %14 = sbr.rel (0) target = $region5
    $region4: #{tpu_custom_call.1} parent=1 // pred_region
      _
    $region5: #{tpu_custom_call.1} parent=1 // pred_fallthru
      _
    // Predicated region
    $region6: #{tpu_custom_call.1} parent=1 // pred_check
      _
    $region7: #{tpu_custom_call.1} parent=1 // pred_check_branch
      %16 = sbr.rel (0) target = $region9
    $region8: #{tpu_custom_call.1} parent=1 // pred_region
      %s18 = ssub.s32 1024, 1024
      %19 = vsyncadd [#allocation4], %s18
      %s20 = sshll.u32 [#allocation3], 4
      %s21 = int_to_ptr.vmem [resolvable:$true] %s20
      %26 = dma.hbm_to_vmem [thread:$0]  %s1, 1024, %s21, [#allocation4], 512, 512, 32
    $region9: #{tpu_custom_call.1} parent=1 // pred_fallthru
      _
    // Predicated region
    $region10: #{tpu_custom_call.1} parent=1 // pred_check
      _
    $region11: #{tpu_custom_call.1} parent=1 // pred_check_branch
      %28 = sbr.rel (0) target = $region13
    $region12: #{tpu_custom_call.1} parent=1 // pred_region
      %s30 = ssub.s32 8192, 8192
      %31 = vsyncadd [#allocation7], %s30
      %s32 = sshll.u32 [#allocation6], 4
      %s33 = int_to_ptr.vmem [resolvable:$true] %s32
      %38 = dma.hbm_to_vmem [thread:$0]  %s2, 8192, %s33, [#allocation7], 128, 128, 8
    $region13: #{tpu_custom_call.1} parent=1 // pred_fallthru
      _
    // Predicated region
    $region14: #{tpu_custom_call.1} parent=1 // pred_check
      _
    $region15: #{tpu_custom_call.1} parent=1 // pred_check_branch
      %40 = sbr.rel (0) target = $region17
    $region16: #{tpu_custom_call.1} parent=1 // pred_region
      _
    $region17: #{tpu_custom_call.1} parent=1 // pred_fallthru
      _
    // Predicated region
    $region18: #{tpu_custom_call.1} parent=1 // pred_check
      _
    $region19: #{tpu_custom_call.1} parent=1 // pred_check_branch
      %42 = sbr.rel (0) target = $region21
    $region20: #{tpu_custom_call.1} parent=1 // pred_region
      %43 = dma.done [#allocation4], 1024
    $region21: #{tpu_custom_call.1} parent=1 // pred_fallthru
      _
    // Predicated region
    $region22: #{tpu_custom_call.1} parent=1 // pred_check
      _
    $region23: #{tpu_custom_call.1} parent=1 // pred_check_branch
      %45 = sbr.rel (0) target = $region25
    $region24: #{tpu_custom_call.1} parent=1 // pred_region
      %46 = dma.done [#allocation7], 8192
    $region25: #{tpu_custom_call.1} parent=1 // pred_fallthru
      _
    %v47 = vld [vmem:[#allocation3] sm:$0xff]
    %v48 = vld [vmem:[#allocation3 + $0x8] sm:$0xff]
    %v49 = vld [vmem:[#allocation3 + $0x10] sm:$0xff]
    %v50 = vld [vmem:[#allocation3 + $0x18] sm:$0xff]
    %v51 = vld [vmem:[#allocation3 + $0x20] sm:$0xff]
    %v52 = vld [vmem:[#allocation3 + $0x28] sm:$0xff]
    %v53 = vld [vmem:[#allocation3 + $0x30] sm:$0xff]
    %v54 = vld [vmem:[#allocation3 + $0x38] sm:$0xff]
    %v55 = vpack.c.bf16 %v51, %v47
    %v56 = vpack.c.bf16 %v52, %v48
    %v57 = vpack.c.bf16 %v53, %v49
    %v58 = vpack.c.bf16 %v54, %v50
    %v59 = vld [vmem:[#allocation6] sm:$0xff]
    %v60 = vld [vmem:[#allocation6 + $0x8] sm:$0xff]
    %v61 = vld [vmem:[#allocation6 + $0x10] sm:$0xff]
    %v62 = vld [vmem:[#allocation6 + $0x18] sm:$0xff]
    %v63 = vld [vmem:[#allocation6 + $0x20] sm:$0xff]
    %v64 = vld [vmem:[#allocation6 + $0x28] sm:$0xff]
    %v65 = vld [vmem:[#allocation6 + $0x30] sm:$0xff]
    %v66 = vld [vmem:[#allocation6 + $0x38] sm:$0xff]
    %v67 = vld [vmem:[#allocation6 + $0x40] sm:$0xff]
    %v68 = vld [vmem:[#allocation6 + $0x48] sm:$0xff]
    %v69 = vld [vmem:[#allocation6 + $0x50] sm:$0xff]
    %v70 = vld [vmem:[#allocation6 + $0x58] sm:$0xff]
    %v71 = vld [vmem:[#allocation6 + $0x60] sm:$0xff]
    %v72 = vld [vmem:[#allocation6 + $0x68] sm:$0xff]
    %v73 = vld [vmem:[#allocation6 + $0x70] sm:$0xff]
    %v74 = vld [vmem:[#allocation6 + $0x78] sm:$0xff]
    %v75 = vld [vmem:[#allocation6 + $0x80] sm:$0xff]
    %v76 = vld [vmem:[#allocation6 + $0x88] sm:$0xff]
    %v77 = vld [vmem:[#allocation6 + $0x90] sm:$0xff]
    %v78 = vld [vmem:[#allocation6 + $0x98] sm:$0xff]
    %v79 = vld [vmem:[#allocation6 + $0xa0] sm:$0xff]
    %v80 = vld [vmem:[#allocation6 + $0xa8] sm:$0xff]
    %v81 = vld [vmem:[#allocation6 + $0xb0] sm:$0xff]
    %v82 = vld [vmem:[#allocation6 + $0xb8] sm:$0xff]
    %v83 = vld [vmem:[#allocation6 + $0xc0] sm:$0xff]
    %v84 = vld [vmem:[#allocation6 + $0xc8] sm:$0xff]
    %v85 = vld [vmem:[#allocation6 + $0xd0] sm:$0xff]
    %v86 = vld [vmem:[#allocation6 + $0xd8] sm:$0xff]
    %v87 = vld [vmem:[#allocation6 + $0xe0] sm:$0xff]
    %v88 = vld [vmem:[#allocation6 + $0xe8] sm:$0xff]
    %v89 = vld [vmem:[#allocation6 + $0xf0] sm:$0xff]
    %v90 = vld [vmem:[#allocation6 + $0xf8] sm:$0xff]
    %v91 = vld [vmem:[#allocation6 + $0x100] sm:$0xff]
    %v92 = vld [vmem:[#allocation6 + $0x108] sm:$0xff]
    %v93 = vld [vmem:[#allocation6 + $0x110] sm:$0xff]
    %v94 = vld [vmem:[#allocation6 + $0x118] sm:$0xff]
    %v95 = vld [vmem:[#allocation6 + $0x120] sm:$0xff]
    %v96 = vld [vmem:[#allocation6 + $0x128] sm:$0xff]
    %v97 = vld [vmem:[#allocation6 + $0x130] sm:$0xff]
    %v98 = vld [vmem:[#allocation6 + $0x138] sm:$0xff]
    %v99 = vld [vmem:[#allocation6 + $0x140] sm:$0xff]
    %v100 = vld [vmem:[#allocation6 + $0x148] sm:$0xff]
    %v101 = vld [vmem:[#allocation6 + $0x150] sm:$0xff]
    %v102 = vld [vmem:[#allocation6 + $0x158] sm:$0xff]
    %v103 = vld [vmem:[#allocation6 + $0x160] sm:$0xff]
    %v104 = vld [vmem:[#allocation6 + $0x168] sm:$0xff]
    %v105 = vld [vmem:[#allocation6 + $0x170] sm:$0xff]
    %v106 = vld [vmem:[#allocation6 + $0x178] sm:$0xff]
    %v107 = vld [vmem:[#allocation6 + $0x180] sm:$0xff]
    %v108 = vld [vmem:[#allocation6 + $0x188] sm:$0xff]
    %v109 = vld [vmem:[#allocation6 + $0x190] sm:$0xff]
    %v110 = vld [vmem:[#allocation6 + $0x198] sm:$0xff]
    %v111 = vld [vmem:[#allocation6 + $0x1a0] sm:$0xff]
    %v112 = vld [vmem:[#allocation6 + $0x1a8] sm:$0xff]
    %v113 = vld [vmem:[#allocation6 + $0x1b0] sm:$0xff]
    %v114 = vld [vmem:[#allocation6 + $0x1b8] sm:$0xff]
    %v115 = vld [vmem:[#allocation6 + $0x1c0] sm:$0xff]
    %v116 = vld [vmem:[#allocation6 + $0x1c8] sm:$0xff]
    %v117 = vld [vmem:[#allocation6 + $0x1d0] sm:$0xff]
    %v118 = vld [vmem:[#allocation6 + $0x1d8] sm:$0xff]
    %v119 = vld [vmem:[#allocation6 + $0x1e0] sm:$0xff]
    %v120 = vld [vmem:[#allocation6 + $0x1e8] sm:$0xff]
    %v121 = vld [vmem:[#allocation6 + $0x1f0] sm:$0xff]
    %v122 = vld [vmem:[#allocation6 + $0x1f8] sm:$0xff]
    %v123 = vld [vmem:[%s3] sm:$0x3]
    %v125 = vlaneseq
    %v126 = vshrl.u32 %v125, 7
    %v127 = vsub.s32 0, %v126
    %v128 = vrot.slane %v123, %v127
    %v129 = vlaneseq
    %v130 = vshrl.u32 %v129, 7
    %v131 = vsub.s32 1, %v130
    %v132 = vrot.slane %v123, %v131
    %v199 = vunpack.c.l.b16 %v59
    %v200 = vunpack.c.h.b16 %v59
    %v201 = vunpack.c.l.b16 %v60
    %v202 = vunpack.c.h.b16 %v60
    %v203 = vunpack.c.l.b16 %v61
    %v204 = vunpack.c.h.b16 %v61
    %v205 = vunpack.c.l.b16 %v62
    %v206 = vunpack.c.h.b16 %v62
    %v207 = vunpack.c.l.b16 %v63
    %v208 = vunpack.c.h.b16 %v63
    %v209 = vunpack.c.l.b16 %v64
    %v210 = vunpack.c.h.b16 %v64
    %v211 = vunpack.c.l.b16 %v65
    %v212 = vunpack.c.h.b16 %v65
    %v213 = vunpack.c.l.b16 %v66
    %v214 = vunpack.c.h.b16 %v66
    %v215 = vunpack.c.l.b16 %v67
    %v216 = vunpack.c.h.b16 %v67
    %v217 = vunpack.c.l.b16 %v68
    %v218 = vunpack.c.h.b16 %v68
    %v219 = vunpack.c.l.b16 %v69
    %v220 = vunpack.c.h.b16 %v69
    %v221 = vunpack.c.l.b16 %v70
    %v222 = vunpack.c.h.b16 %v70
    %v223 = vunpack.c.l.b16 %v71
    %v224 = vunpack.c.h.b16 %v71
    %v225 = vunpack.c.l.b16 %v72
    %v226 = vunpack.c.h.b16 %v72
    %v227 = vunpack.c.l.b16 %v73
    %v228 = vunpack.c.h.b16 %v73
    %v229 = vunpack.c.l.b16 %v74
    %v230 = vunpack.c.h.b16 %v74
    %v231 = vunpack.c.l.b16 %v75
    %v232 = vunpack.c.h.b16 %v75
    %v233 = vunpack.c.l.b16 %v76
    %v234 = vunpack.c.h.b16 %v76
    %v235 = vunpack.c.l.b16 %v77
    %v236 = vunpack.c.h.b16 %v77
    %v237 = vunpack.c.l.b16 %v78
    %v238 = vunpack.c.h.b16 %v78
    %v239 = vunpack.c.l.b16 %v79
    %v240 = vunpack.c.h.b16 %v79
    %v241 = vunpack.c.l.b16 %v80
    %v242 = vunpack.c.h.b16 %v80
    %v243 = vunpack.c.l.b16 %v81
    %v244 = vunpack.c.h.b16 %v81
    %v245 = vunpack.c.l.b16 %v82
    %v246 = vunpack.c.h.b16 %v82
    %v247 = vunpack.c.l.b16 %v83
    %v248 = vunpack.c.h.b16 %v83
    %v249 = vunpack.c.l.b16 %v84
    %v250 = vunpack.c.h.b16 %v84
    %v251 = vunpack.c.l.b16 %v85
    %v252 = vunpack.c.h.b16 %v85
    %v253 = vunpack.c.l.b16 %v86
    %v254 = vunpack.c.h.b16 %v86
    %v255 = vunpack.c.l.b16 %v87
    %v256 = vunpack.c.h.b16 %v87
    %v257 = vunpack.c.l.b16 %v88
    %v258 = vunpack.c.h.b16 %v88
    %v259 = vunpack.c.l.b16 %v89
    %v260 = vunpack.c.h.b16 %v89
    %v261 = vunpack.c.l.b16 %v90
    %v262 = vunpack.c.h.b16 %v90
    %v263 = vunpack.c.l.b16 %v91
    %v264 = vunpack.c.h.b16 %v91
    %v265 = vunpack.c.l.b16 %v92
    %v266 = vunpack.c.h.b16 %v92
    %v267 = vunpack.c.l.b16 %v93
    %v268 = vunpack.c.h.b16 %v93
    %v269 = vunpack.c.l.b16 %v94
    %v270 = vunpack.c.h.b16 %v94
    %v271 = vunpack.c.l.b16 %v95
    %v272 = vunpack.c.h.b16 %v95
    %v273 = vunpack.c.l.b16 %v96
    %v274 = vunpack.c.h.b16 %v96
    %v275 = vunpack.c.l.b16 %v97
    %v276 = vunpack.c.h.b16 %v97
    %v277 = vunpack.c.l.b16 %v98
    %v278 = vunpack.c.h.b16 %v98
    %v279 = vunpack.c.l.b16 %v99
    %v280 = vunpack.c.h.b16 %v99
    %v281 = vunpack.c.l.b16 %v100
    %v282 = vunpack.c.h.b16 %v100
    %v283 = vunpack.c.l.b16 %v101
    %v284 = vunpack.c.h.b16 %v101
    %v285 = vunpack.c.l.b16 %v102
    %v286 = vunpack.c.h.b16 %v102
    %v287 = vunpack.c.l.b16 %v103
    %v288 = vunpack.c.h.b16 %v103
    %v289 = vunpack.c.l.b16 %v104
    %v290 = vunpack.c.h.b16 %v104
    %v291 = vunpack.c.l.b16 %v105
    %v292 = vunpack.c.h.b16 %v105
    %v293 = vunpack.c.l.b16 %v106
    %v294 = vunpack.c.h.b16 %v106
    %v295 = vunpack.c.l.b16 %v107
    %v296 = vunpack.c.h.b16 %v107
    %v297 = vunpack.c.l.b16 %v108
    %v298 = vunpack.c.h.b16 %v108
    %v299 = vunpack.c.l.b16 %v109
    %v300 = vunpack.c.h.b16 %v109
    %v301 = vunpack.c.l.b16 %v110
    %v302 = vunpack.c.h.b16 %v110
    %v303 = vunpack.c.l.b16 %v111
    %v304 = vunpack.c.h.b16 %v111
    %v305 = vunpack.c.l.b16 %v112
    %v306 = vunpack.c.h.b16 %v112
    %v307 = vunpack.c.l.b16 %v113
    %v308 = vunpack.c.h.b16 %v113
    %v309 = vunpack.c.l.b16 %v114
    %v310 = vunpack.c.h.b16 %v114
    %v311 = vunpack.c.l.b16 %v115
    %v312 = vunpack.c.h.b16 %v115
    %v313 = vunpack.c.l.b16 %v116
    %v314 = vunpack.c.h.b16 %v116
    %v315 = vunpack.c.l.b16 %v117
    %v316 = vunpack.c.h.b16 %v117
    %v317 = vunpack.c.l.b16 %v118
    %v318 = vunpack.c.h.b16 %v118
    %v319 = vunpack.c.l.b16 %v119
    %v320 = vunpack.c.h.b16 %v119
    %v321 = vunpack.c.l.b16 %v120
    %v322 = vunpack.c.h.b16 %v120
    %v323 = vunpack.c.l.b16 %v121
    %v324 = vunpack.c.h.b16 %v121
    %v325 = vunpack.c.l.b16 %v122
    %v326 = vunpack.c.h.b16 %v122
    %v327 = vpack.c.b16 %v201, %v199
    %v328 = vpack.c.b16 %v202, %v200
    %v329 = vpack.c.b16 %v205, %v203
    %v330 = vpack.c.b16 %v206, %v204
    %v331 = vpack.c.b16 %v209, %v207
    %v332 = vpack.c.b16 %v210, %v208
    %v333 = vpack.c.b16 %v213, %v211
    %v334 = vpack.c.b16 %v214, %v212
    %v335 = vpack.c.b16 %v217, %v215
    %v336 = vpack.c.b16 %v218, %v216
    %v337 = vpack.c.b16 %v221, %v219
    %v338 = vpack.c.b16 %v222, %v220
    %v339 = vpack.c.b16 %v225, %v223
    %v340 = vpack.c.b16 %v226, %v224
    %v341 = vpack.c.b16 %v229, %v227
    %v342 = vpack.c.b16 %v230, %v228
    %v343 = vpack.c.b16 %v233, %v231
    %v344 = vpack.c.b16 %v234, %v232
    %v345 = vpack.c.b16 %v237, %v235
    %v346 = vpack.c.b16 %v238, %v236
    %v347 = vpack.c.b16 %v241, %v239
    %v348 = vpack.c.b16 %v242, %v240
    %v349 = vpack.c.b16 %v245, %v243
    %v350 = vpack.c.b16 %v246, %v244
    %v351 = vpack.c.b16 %v249, %v247
    %v352 = vpack.c.b16 %v250, %v248
    %v353 = vpack.c.b16 %v253, %v251
    %v354 = vpack.c.b16 %v254, %v252
    %v355 = vpack.c.b16 %v257, %v255
    %v356 = vpack.c.b16 %v258, %v256
    %v357 = vpack.c.b16 %v261, %v259
    %v358 = vpack.c.b16 %v262, %v260
    %v359 = vpack.c.b16 %v265, %v263
    %v360 = vpack.c.b16 %v266, %v264
    %v361 = vpack.c.b16 %v269, %v267
    %v362 = vpack.c.b16 %v270, %v268
    %v363 = vpack.c.b16 %v273, %v271
    %v364 = vpack.c.b16 %v274, %v272
    %v365 = vpack.c.b16 %v277, %v275
    %v366 = vpack.c.b16 %v278, %v276
    %v367 = vpack.c.b16 %v281, %v279
    %v368 = vpack.c.b16 %v282, %v280
    %v369 = vpack.c.b16 %v285, %v283
    %v370 = vpack.c.b16 %v286, %v284
    %v371 = vpack.c.b16 %v289, %v287
    %v372 = vpack.c.b16 %v290, %v288
    %v373 = vpack.c.b16 %v293, %v291
    %v374 = vpack.c.b16 %v294, %v292
    %v375 = vpack.c.b16 %v297, %v295
    %v376 = vpack.c.b16 %v298, %v296
    %v377 = vpack.c.b16 %v301, %v299
    %v378 = vpack.c.b16 %v302, %v300
    %v379 = vpack.c.b16 %v305, %v303
    %v380 = vpack.c.b16 %v306, %v304
    %v381 = vpack.c.b16 %v309, %v307
    %v382 = vpack.c.b16 %v310, %v308
    %v383 = vpack.c.b16 %v313, %v311
    %v384 = vpack.c.b16 %v314, %v312
    %v385 = vpack.c.b16 %v317, %v315
    %v386 = vpack.c.b16 %v318, %v316
    %v387 = vpack.c.b16 %v321, %v319
    %v388 = vpack.c.b16 %v322, %v320
    %v389 = vpack.c.b16 %v325, %v323
    %v390 = vpack.c.b16 %v326, %v324
    %455 = vmatprep.subr.bf16.mxu0 %v342
    %456 = vmatpush1.bf16.msra.mxu0 %v341
    %457 = vmatprep.subr.bf16.mxu0 %v340
    %458 = vmatpush1.bf16.msra.mxu0 %v339
    %459 = vmatprep.subr.bf16.mxu0 %v338
    %460 = vmatpush1.bf16.msra.mxu0 %v337
    %461 = vmatprep.subr.bf16.mxu0 %v336
    %462 = vmatpush1.bf16.msra.mxu0 %v335
    %463 = vmatprep.subr.bf16.mxu0 %v334
    %464 = vmatpush1.bf16.msra.mxu0 %v333
    %465 = vmatprep.subr.bf16.mxu0 %v332
    %466 = vmatpush1.bf16.msra.mxu0 %v331
    %467 = vmatprep.subr.bf16.mxu0 %v330
    %468 = vmatpush1.bf16.msra.mxu0 %v329
    %469 = vmatprep.subr.bf16.mxu0 %v328
    %470 = vmatpush1.bf16.msra.mxu0 %v327
    %471 = vmatprep.subr.bf16.mxu0 %v358
    %472 = vmatpush2.bf16.msra.mxu0 %v357
    %473 = vmatprep.subr.bf16.mxu0 %v356
    %474 = vmatpush2.bf16.msra.mxu0 %v355
    %475 = vmatprep.subr.bf16.mxu0 %v354
    %476 = vmatpush2.bf16.msra.mxu0 %v353
    %477 = vmatprep.subr.bf16.mxu0 %v352
    %478 = vmatpush2.bf16.msra.mxu0 %v351
    %479 = vmatprep.subr.bf16.mxu0 %v350
    %480 = vmatpush2.bf16.msra.mxu0 %v349
    %481 = vmatprep.subr.bf16.mxu0 %v348
    %482 = vmatpush2.bf16.msra.mxu0 %v347
    %483 = vmatprep.subr.bf16.mxu0 %v346
    %484 = vmatpush2.bf16.msra.mxu0 %v345
    %485 = vmatprep.subr.bf16.mxu0 %v344
    %486 = vmatpush2.bf16.msra.mxu0 %v343
    %487 = vmatprep.mubr.bf16.mxu0 %v56
    %488 = vmatmul.mubr.bf16.gmra.mxu0 %v55
    %v489 = vpop.f32.mrf.mxu0
    %v490 = vadd.f32 %v128, %v489
    %v491 = vpop.f32.mrf.mxu0
    %v492 = vadd.f32 %v132, %v491
    %v493 = vpop.f32.mrf.mxu0
    %v494 = vadd.f32 %v128, %v493
    %v495 = vpop.f32.mrf.mxu0
    %v496 = vadd.f32 %v132, %v495
    %497 = vdwg.mxu0
    %498 = vmatprep.subr.bf16.mxu0 %v374
    %499 = vmatpush1.bf16.msra.mxu0 %v373
    %500 = vmatprep.subr.bf16.mxu0 %v372
    %501 = vmatpush1.bf16.msra.mxu0 %v371
    %502 = vmatprep.subr.bf16.mxu0 %v370
    %503 = vmatpush1.bf16.msra.mxu0 %v369
    %504 = vmatprep.subr.bf16.mxu0 %v368
    %505 = vmatpush1.bf16.msra.mxu0 %v367
    %506 = vmatprep.subr.bf16.mxu0 %v366
    %507 = vmatpush1.bf16.msra.mxu0 %v365
    %508 = vmatprep.subr.bf16.mxu0 %v364
    %509 = vmatpush1.bf16.msra.mxu0 %v363
    %510 = vmatprep.subr.bf16.mxu0 %v362
    %511 = vmatpush1.bf16.msra.mxu0 %v361
    %512 = vmatprep.subr.bf16.mxu0 %v360
    %513 = vmatpush1.bf16.msra.mxu0 %v359
    %514 = vmatprep.subr.bf16.mxu0 %v390
    %515 = vmatpush2.bf16.msra.mxu0 %v389
    %516 = vmatprep.subr.bf16.mxu0 %v388
    %517 = vmatpush2.bf16.msra.mxu0 %v387
    %518 = vmatprep.subr.bf16.mxu0 %v386
    %519 = vmatpush2.bf16.msra.mxu0 %v385
    %520 = vmatprep.subr.bf16.mxu0 %v384
    %521 = vmatpush2.bf16.msra.mxu0 %v383
    %522 = vmatprep.subr.bf16.mxu0 %v382
    %523 = vmatpush2.bf16.msra.mxu0 %v381
    %524 = vmatprep.subr.bf16.mxu0 %v380
    %525 = vmatpush2.bf16.msra.mxu0 %v379
    %526 = vmatprep.subr.bf16.mxu0 %v378
    %527 = vmatpush2.bf16.msra.mxu0 %v377
    %528 = vmatprep.subr.bf16.mxu0 %v376
    %529 = vmatpush2.bf16.msra.mxu0 %v375
    %530 = vmatprep.mubr.bf16.mxu0 %v58
    %531 = vmatmul.mubr.bf16.gmra.mxu0 %v57
    %v532 = vpop.f32.mrf.mxu0
    %v533 = vadd.f32 %v490, %v532
    %v534 = vpop.f32.mrf.mxu0
    %v535 = vadd.f32 %v492, %v534
    %v536 = vpop.f32.mrf.mxu0
    %v537 = vadd.f32 %v494, %v536
    %v538 = vpop.f32.mrf.mxu0
    %v539 = vadd.f32 %v496, %v538
    %540 = vdwg.mxu0
    %s541 = sld [smem:[#allocation2]]
    %vm542 = vcmp.gt.f32.partialorder %v533, 0.0
    %vm543 = vcmp.gt.f32.partialorder %v535, 0.0
    %vm544 = vcmp.gt.f32.partialorder %v537, 0.0
    %vm545 = vcmp.gt.f32.partialorder %v539, 0.0
    %v546 = vstv %s541
    %v547 = vmul.f32 %v546, %v533
    %v548 = vmul.f32 %v546, %v535
    %v549 = vmul.f32 %v546, %v537
    %v550 = vmul.f32 %v546, %v539
    %v551 = vsel %vm542, %v533, %v547
    %v552 = vsel %vm543, %v535, %v548
    %v553 = vsel %vm544, %v537, %v549
    %v554 = vsel %vm545, %v539, %v550
    %555 = vst [vmem:[#allocation8] sm:$0xff] %v551
    %556 = vst [vmem:[#allocation8 + $0x8] sm:$0xff] %v552
    %557 = vst [vmem:[#allocation8 + $0x10] sm:$0xff] %v553
    %558 = vst [vmem:[#allocation8 + $0x18] sm:$0xff] %v554
    // Predicated region
    $region26: #{tpu_custom_call.1} parent=1 // pred_check
      _
    $region27: #{tpu_custom_call.1} parent=1 // pred_check_branch
      %560 = sbr.rel (0) target = $region29
    $region28: #{tpu_custom_call.1} parent=1 // pred_region
      %s562 = ssub.s32 512, 512
      %563 = vsyncadd [#allocation5], %s562
      %s564 = sshll.u32 [#allocation8], 4
      %s565 = int_to_ptr.vmem [resolvable:$true] %s564
      %570 = dma.vmem_to_hbm [thread:$0]  %s565, 512, %s4, [#allocation5], 256, 256, 16
    $region29: #{tpu_custom_call.1} parent=1 // pred_fallthru
      _
    // Predicated region
    $region30: #{tpu_custom_call.1} parent=1 // pred_check
      _
    $region31: #{tpu_custom_call.1} parent=1 // pred_check_branch
      %572 = sbr.rel (0) target = $region33
    $region32: #{tpu_custom_call.1} parent=1 // pred_region
      %573 = dma.done [#allocation5], 512
    $region33: #{tpu_custom_call.1} parent=1 // pred_fallthru
      _
    %574 = vsyncpa [#allocation4], 1
    %575 = vsyncpa [#allocation7], 1
    %576 = vsyncpa [#allocation5], 1

</llo_original>
